<compile_context>
chip_gen: v5e
topology: v5e:2x2
jax: 0.10.0
libtpu: 0.0.40
codegen_flags: <defaults>
</compile_context>

<pallas_src>
import functools

import jax
import jax.numpy as jnp
from jax.experimental import pallas as pl
from jax.experimental.pallas import tpu as pltpu


def _round_up(x: int, m: int) -> int:
    return ((x + m - 1) // m) * m


# ---------------------------------------------------------------------------
# Single-gate forward: identity pass-through of the parameter (perf review #1:
# do not wrap a 64-byte copy in a custom call).
# ---------------------------------------------------------------------------
def depth0_gate(weight, *unused_args, **unused_kwargs):
    """Pallas-side equivalent of Depth_0_Gate.forward for one gate.

    The torch forward ignores its inputs and returns the parameter; the
    fastest correct TPU implementation is to return it directly.
    """
    return weight


# ---------------------------------------------------------------------------
# Batched forward: N Depth_0 gates evaluated in one lane-dense Pallas call.
# ---------------------------------------------------------------------------
def _slab_passthrough_kernel(w_ref, o_ref):
    # Whole-slab copy; with input_output_aliases the HBM output buffer is the
    # input buffer, so this is the minimal data movement for a materialized
    # output.  Full-lane (multiple of 128) rows -> unmasked stores.
    o_ref[...] = w_ref[...]


@jax.jit
def depth0_gate_batched(gate_weights):
    """Forward for a stack of Depth_0 gates.

    gate_weights: [n_gates, output_dim].  Returns an array equal to
    gate_weights (each gate's forward is its own weight row).
    """
    n, d = gate_weights.shape
    n_pad = _round_up(max(n, 1), 8)      # sublane-aligned rows
    d_pad = _round_up(max(d, 1), 128)    # lane-dense last dim

    slab = jnp.zeros((n_pad, d_pad), dtype=gate_weights.dtype)
    slab = slab.at[:n, :d].set(gate_weights)

    out = pl.pallas_call(
        _slab_passthrough_kernel,
        out_shape=jax.ShapeDtypeStruct((n_pad, d_pad), gate_weights.dtype),
        # Gridless call: the whole (8k, 128m) slab is one VMEM-resident block.
        in_specs=[pl.BlockSpec(memory_space=pltpu.MemorySpace.VMEM)],
        out_specs=pl.BlockSpec(memory_space=pltpu.MemorySpace.VMEM),
        # Reuse the (jit-temporary) padded slab as the output buffer.
        input_output_aliases={0: 0},
    )(slab)

    return out[:n, :d]


def reference_single(weight, *args, **kwargs):
    return weight


def reference_batched(gate_weights):
    return gate_weights


if __name__ == "__main__":
    output_dim = 16
    init_lambda = 0.2
    n_gates = 12

    key = jax.random.PRNGKey(0)
    k_x, k_w = jax.random.split(key)

    # Dummy hidden-state input -- ignored by the gate, exactly as in torch.
    x = jax.random.normal(k_x, (8, 32), dtype=jnp.float32)

    # init_weight(init_lambda): nn.init.constant_(weight, init_lambda)
    weight = jnp.full((output_dim,), init_lambda, dtype=jnp.float32)

    # A stack of gate weights (e.g. one Depth_0_Gate per layer), arbitrary values.
    gate_weights = jax.random.normal(k_w, (n_gates, output_dim), dtype=jnp.float32)

    # --- single-gate path (identity, no custom call) ---
    out_single = jax.block_until_ready(depth0_gate(weight, x))
    assert out_single.shape == (output_dim,)
    assert jnp.array_equal(out_single, reference_single(weight, x))

    # --- batched path (one lane-dense Pallas call for all gates) ---
    out_batched = jax.block_until_ready(depth0_gate_batched(gate_weights))
    assert out_batched.shape == (n_gates, output_dim)
    assert out_batched.dtype == gate_weights.dtype
    assert jnp.array_equal(out_batched, reference_batched(gate_weights))

    print("KERNEL_OK")
</pallas_src>

<mosaic_0001>
module attributes {stable_mosaic.version = 11 : i64} {
  func.func @_slab_passthrough_kernel(%arg0: memref<16x128xf32, #tpu.memory_space<vmem>>, %arg1: memref<16x128xf32, #tpu.memory_space<vmem>>) attributes {dimension_semantics = [], scalar_prefetch = 0 : i64, scratch_operands = 0 : i64, tpu.core_type = #tpu.core_type<tc>} {
    %c0 = arith.constant 0 : index
    %c0_0 = arith.constant 0 : index
    %0 = vector.load %arg0[%c0, %c0_0] : memref<16x128xf32, #tpu.memory_space<vmem>>, vector<16x128xf32>
    %c0_1 = arith.constant 0 : index
    %c0_2 = arith.constant 0 : index
    %1 = vector.load %arg1[%c0_1, %c0_2] : memref<16x128xf32, #tpu.memory_space<vmem>>, vector<16x128xf32>
    tpu.vector_store %arg1[%c0_1, %c0_2], %0 {strides = array<i32>} : memref<16x128xf32, #tpu.memory_space<vmem>>, vector<16x128xf32>,
    return
  }
}

</mosaic_0001>

<llo_original>
// kernel: depth0_gate_batched.1
$region0: #{depth0_gate_batched.1}
  #allocation0 [shape = 'u32[]', space=smem, size = 0x4, offset = 0x4, fixed_abs, tag = 'smem constant byte address 0x4 - core index']
  #allocation1 [shape = 'u32[72,128]{1,0:T(1,128)}', space=vmem, size = 0x9000, scoped, tag = 'internal scratch']
  %s0 = inlined_call_operand.vmem [shape: f32[16,128], index: 0, kind: input, shape index: {}, may-alias: {0,1}]
  %s1 = inlined_call_operand.vmem [shape: f32[16,128], index: 1, kind: output, shape index: {}, may-alias: {0,1}]
  %s2 = sld [smem:[#allocation0]]
  $region14: #{depth0_gate_batched.1} parent=0
    _
  %s4 = ssub.s32 1, %s2
  %s5 = scalar_select 0, %s4, %s2
  // Predicated region
  $region2: #{depth0_gate_batched.1} parent=0 // pred_check
    _
  $region3: #{depth0_gate_batched.1} parent=0 // pred_check_branch
    %7 = sbr.rel (0) target = $region5
  $region4: #{depth0_gate_batched.1} parent=0 // pred_region
    _
  $region5: #{depth0_gate_batched.1} parent=0 // pred_fallthru
    _
  %v8 = vld [vmem:[%s0] sm:$0xff]
  %v9 = vld [vmem:[%s0 + $0x8] sm:$0xff]
  %10 = vst [vmem:[%s1] sm:$0xff] %v8
  %11 = vst [vmem:[%s1 + $0x8] sm:$0xff] %v9
  // Predicated region
  $region6: #{depth0_gate_batched.1} parent=0 // pred_check
    _
  $region7: #{depth0_gate_batched.1} parent=0 // pred_check_branch
    %13 = sbr.rel (0) target = $region9
  $region8: #{depth0_gate_batched.1} parent=0 // pred_region
    _
  $region9: #{depth0_gate_batched.1} parent=0 // pred_fallthru
    _
  // Predicated region
  $region10: #{depth0_gate_batched.1} parent=0 // pred_check
    _
  $region11: #{depth0_gate_batched.1} parent=0 // pred_check_branch
    %15 = sbr.rel (0) target = $region13
  $region12: #{depth0_gate_batched.1} parent=0 // pred_region
    _
  $region13: #{depth0_gate_batched.1} parent=0 // pred_fallthru
    _

</llo_original>
